<compile_context>
chip_gen: v6e
topology: v6e:2x2x1
jax: 0.10.0
libtpu: 0.0.40
codegen_flags: <defaults>
</compile_context>

<pallas_src>
import functools

import jax
import jax.numpy as jnp
from jax.experimental import pallas as pl
from jax.experimental.pallas import tpu as pltpu

NEG_SLOPE = 0.01  # F.leaky_relu default negative_slope


# --------------------------------------------------------------------------- #
# Kernel bodies
# --------------------------------------------------------------------------- #
def _encoder_body(x_ref, eps_ref, w_ref, b_ref, out_ref, *,
                  layer_dims, n_trans, n_path, latent_dim, matmul_dtype):
    """Shared compute: MLP -> reparameterize -> KL.  Returns the scalar KL (f32).

    x_ref   : [TB, n_total] packed [trans | prior_mu | prior_var | prior_log_var]
    eps_ref : [TB, latent_dim]
    w_ref   : [n_layers, in_max, out_max]  zero-padded weight slab
    b_ref   : [n_layers, out_max]          zero-padded bias slab
    out_ref : [TB, 3*latent_dim]           [mu | log_var | z]
    """
    n_layers = len(layer_dims)

    # --- MLP over the "transformed" features (MXU matmuls, f32 accumulate) ---
    h = x_ref[:, 0:n_trans]                                  # [TB, n_trans] f32
    for li, (din, dout) in enumerate(layer_dims):
        w = w_ref[li][0:din, 0:dout]                         # static slice of padded slab
        b = b_ref[li:li + 1, 0:dout]                         # [1, dout]
        if matmul_dtype != jnp.float32:
            h_mm = h.astype(matmul_dtype)
            w = w.astype(matmul_dtype)
        else:
            h_mm = h
        h = jnp.dot(h_mm, w, preferred_element_type=jnp.float32) + b
        if li < n_layers - 1:
            # leaky_relu: for 0 < slope < 1, max(h, slope*h) == leaky_relu(h)
            h = jnp.maximum(h, NEG_SLOPE * h)

    # final layer output h == [mu | log_var] contiguously, width 2*latent_dim
    mu = h[:, 0:latent_dim]
    log_var = h[:, latent_dim:2 * latent_dim]

    # --- reparameterization: z = mu + eps * exp(0.5 * log_var) ---
    std = jnp.exp(0.5 * log_var)                             # single EUP exp
    z = mu + eps_ref[...] * std
    var = std * std                                          # == exp(log_var), VPU mul

    # --- KL against the priors (sliced from the packed input) ---
    prior_mu = x_ref[:, n_trans:n_trans + n_path]
    prior_var = x_ref[:, n_trans + n_path:n_trans + 2 * n_path]
    prior_log_var = x_ref[:, n_trans + 2 * n_path:n_trans + 3 * n_path]
    kl_terms = (1.0 + log_var - prior_log_var
                - ((mu - prior_mu) ** 2 + var) / prior_var)
    kl = -0.5 * jnp.sum(kl_terms)

    # direct slab stores (no lane-axis concatenate)
    out_ref[:, 0:2 * latent_dim] = h
    out_ref[:, 2 * latent_dim:3 * latent_dim] = z
    return kl


def _encoder_kernel_single(x_ref, eps_ref, w_ref, b_ref, out_ref, kl_ref, **static):
    """Whole batch in one invocation (no grid); scalar KL to SMEM."""
    kl = _encoder_body(x_ref, eps_ref, w_ref, b_ref, out_ref, **static)
    kl_ref[0, 0] = kl


def _encoder_kernel_tiled(x_ref, eps_ref, w_ref, b_ref, out_ref, klp_ref, **static):
    """One batch tile per grid step; per-tile KL partial (summed in the wrapper)."""
    kl = _encoder_body(x_ref, eps_ref, w_ref, b_ref, out_ref, **static)
    klp_ref[...] = jnp.reshape(kl, (1, 1, 1))


# --------------------------------------------------------------------------- #
# Wrapper
# --------------------------------------------------------------------------- #
def encoder_forward(x, eps, params, *, n_trans, n_path, latent_dim,
                    batch_tile=None, matmul_dtype=jnp.float32):
    """params: list of (W [in,out], b [out]) per Linear layer (incl. final).

    batch_tile=None (or B <= batch_tile): single-invocation path.
    batch_tile=TB with B % TB == 0: batch-tiled grid, weights resident,
      per-tile KL partials, batch axis "parallel" (v7x megacore sharding).
    """
    B, n_total = x.shape
    n_layers = len(params)

    # Silent preconditions of the PyTorch module made explicit.
    assert params[0][0].shape[0] == n_trans, "first Linear in_features must equal n_features_trans"
    assert params[-1][0].shape[1] == 2 * latent_dim, "last Linear must output 2*latent_dim"
    assert latent_dim == n_path, "KL broadcast requires latent_dim == n_features_path"
    assert n_total >= n_trans + 3 * n_path, "packed input too narrow"

    x = x.astype(jnp.float32)
    eps = eps.astype(jnp.float32)

    layer_dims = tuple((int(w.shape[0]), int(w.shape[1])) for (w, _) in params)
    in_max = max(d for d, _ in layer_dims)
    out_max = max(d for _, d in layer_dims)

    # Pack all weights / biases into two zero-padded operands (2 DMAs, not 2*n_layers).
    w_packed = jnp.zeros((n_layers, in_max, out_max), jnp.float32)
    b_packed = jnp.zeros((n_layers, out_max), jnp.float32)
    for li, (w, b) in enumerate(params):
        w_packed = w_packed.at[li, :w.shape[0], :w.shape[1]].set(w.astype(jnp.float32))
        b_packed = b_packed.at[li, :b.shape[0]].set(b.astype(jnp.float32))

    static = dict(layer_dims=layer_dims, n_trans=n_trans, n_path=n_path,
                  latent_dim=latent_dim, matmul_dtype=matmul_dtype)

    if batch_tile is None or B <= batch_tile:
        # ---- single invocation: 4 input DMAs, one fused output slab, scalar KL ----
        kernel = functools.partial(_encoder_kernel_single, **static)
        vmem = pl.BlockSpec(memory_space=pltpu.MemorySpace.VMEM)
        smem = pl.BlockSpec(memory_space=pltpu.MemorySpace.SMEM)
        out_slab, kl = pl.pallas_call(
            kernel,
            in_specs=[vmem, vmem, vmem, vmem],
            out_specs=(vmem, smem),
            out_shape=(
                jax.ShapeDtypeStruct((B, 3 * latent_dim), jnp.float32),  # [mu|logvar|z]
                jax.ShapeDtypeStruct((1, 1), jnp.float32),               # kl (self.kl)
            ),
        )(x, eps, w_packed, b_packed)
        kl_total = kl[0, 0]
    else:
        # ---- batch-tiled grid: weights resident, per-tile KL partials ----
        TB = batch_tile
        assert B % TB == 0, "batch must be a multiple of batch_tile (pad upstream)"
        n_tiles = B // TB
        kernel = functools.partial(_encoder_kernel_tiled, **static)
        grid_spec = pltpu.PrefetchScalarGridSpec(
            num_scalar_prefetch=0,
            grid=(n_tiles,),
            in_specs=[
                pl.BlockSpec((TB, n_total), lambda i: (i, 0)),
                pl.BlockSpec((TB, latent_dim), lambda i: (i, 0)),
                pl.BlockSpec((n_layers, in_max, out_max), lambda i: (0, 0, 0)),  # resident
                pl.BlockSpec((n_layers, out_max), lambda i: (0, 0)),             # resident
            ],
            out_specs=(
                pl.BlockSpec((TB, 3 * latent_dim), lambda i: (i, 0)),
                pl.BlockSpec((1, 1, 1), lambda i: (i, 0, 0)),   # per-tile KL partial
            ),
        )
        out_slab, kl_parts = pl.pallas_call(
            kernel,
            grid_spec=grid_spec,
            out_shape=(
                jax.ShapeDtypeStruct((B, 3 * latent_dim), jnp.float32),
                jax.ShapeDtypeStruct((n_tiles, 1, 1), jnp.float32),
            ),
            compiler_params=pltpu.CompilerParams(
                # batch tiles are independent -> shard across v7x's 2 TensorCores
                dimension_semantics=("parallel",),
            ),
        )(x, eps, w_packed, b_packed)
        kl_total = jnp.sum(kl_parts)

    mu = out_slab[:, 0:latent_dim]
    log_var = out_slab[:, latent_dim:2 * latent_dim]
    z = out_slab[:, 2 * latent_dim:3 * latent_dim]
    return mu, log_var, z, kl_total


# --------------------------------------------------------------------------- #
# Pure-JAX reference (replicates the PyTorch forward exactly)
# --------------------------------------------------------------------------- #
def encoder_reference(x, eps, params, *, n_trans, n_path, latent_dim):
    h = x[:, 0:n_trans]
    n_layers = len(params)
    for li, (w, b) in enumerate(params):
        h = h @ w + b
        if li < n_layers - 1:
            h = jnp.where(h > 0, h, NEG_SLOPE * h)
    mu = h[:, 0:latent_dim]
    log_var = h[:, latent_dim:2 * latent_dim]
    z = mu + eps * jnp.exp(0.5 * log_var)
    prior_mu = x[:, n_trans:n_trans + n_path]
    prior_var = x[:, n_trans + n_path:n_trans + 2 * n_path]
    prior_log_var = x[:, n_trans + 2 * n_path:n_trans + 3 * n_path]
    kl = -0.5 * jnp.sum(
        1.0 + log_var - prior_log_var
        - ((mu - prior_mu) ** 2 + jnp.exp(log_var)) / prior_var
    )
    return mu, log_var, z, kl


if __name__ == "__main__":
    key = jax.random.PRNGKey(0)

    n_features_trans = 16          # == n_input (first Linear's in_features)
    n_features_path = 8
    latent_dim = 8                 # must equal n_features_path (KL broadcast)
    encoder_config = [32, 32]

    # deterministic synthetic parameters (not a checkpoint)
    dims = []
    in_sz = n_features_trans
    for neurons in encoder_config:
        dims.append((in_sz, neurons))
        in_sz = neurons
    dims.append((in_sz, 2 * latent_dim))

    params = []
    for (din, dout) in dims:
        key, kw, kb = jax.random.split(key, 3)
        w = jax.random.normal(kw, (din, dout), jnp.float32) / jnp.sqrt(float(din))
        b = jax.random.normal(kb, (dout,), jnp.float32) * 0.01
        params.append((w, b))

    def make_inputs(k, batch):
        k1, k2, k3, k4, keps = jax.random.split(k, 5)
        x_trans = jax.random.normal(k1, (batch, n_features_trans), jnp.float32)
        prior_mu = jax.random.normal(k2, (batch, n_features_path), jnp.float32)
        prior_var = jnp.abs(jax.random.normal(k3, (batch, n_features_path), jnp.float32)) + 0.5
        prior_log_var = jax.random.normal(k4, (batch, n_features_path), jnp.float32) * 0.1
        xx = jnp.concatenate([x_trans, prior_mu, prior_var, prior_log_var], axis=1)
        ee = jax.random.normal(keps, (batch, latent_dim), jnp.float32)
        return xx, ee

    key, k_small, k_big = jax.random.split(key, 3)

    # --- small batch: single-invocation path ---
    x, eps = make_inputs(k_small, 8)
    mu, log_var, z, kl = encoder_forward(
        x, eps, params,
        n_trans=n_features_trans, n_path=n_features_path, latent_dim=latent_dim,
    )
    jax.block_until_ready((mu, log_var, z, kl))

    mu_r, lv_r, z_r, kl_r = encoder_reference(
        x, eps, params,
        n_trans=n_features_trans, n_path=n_features_path, latent_dim=latent_dim,
    )
    assert jnp.allclose(mu, mu_r, rtol=1e-5, atol=1e-5)
    assert jnp.allclose(log_var, lv_r, rtol=1e-5, atol=1e-5)
    assert jnp.allclose(z, z_r, rtol=1e-5, atol=1e-5)
    assert jnp.allclose(kl, kl_r, rtol=1e-4, atol=1e-4)

    # --- larger batch: batch-tiled grid path (weights resident, parallel batch axis) ---
    xb, epsb = make_inputs(k_big, 256)
    mub, lvb, zb, klb = encoder_forward(
        xb, epsb, params,
        n_trans=n_features_trans, n_path=n_features_path, latent_dim=latent_dim,
        batch_tile=128,
    )
    jax.block_until_ready((mub, lvb, zb, klb))

    mub_r, lvb_r, zb_r, klb_r = encoder_reference(
        xb, epsb, params,
        n_trans=n_features_trans, n_path=n_features_path, latent_dim=latent_dim,
    )
    assert jnp.allclose(mub, mub_r, rtol=1e-5, atol=1e-5)
    assert jnp.allclose(lvb, lvb_r, rtol=1e-5, atol=1e-5)
    assert jnp.allclose(zb, zb_r, rtol=1e-5, atol=1e-5)
    assert jnp.allclose(klb, klb_r, rtol=1e-4, atol=1e-3)

    # TODO(synk): for very wide configs on v6e, pad the final layer out width to a
    # 128-multiple (lane-dense unmasked stores) and pass matmul_dtype=jnp.bfloat16.
    print("KERNEL_OK")
</pallas_src>

<mosaic_0001>
module attributes {stable_mosaic.version = 11 : i64} {
  func.func @_encoder_kernel_single(%arg0: memref<8x40xf32, #tpu.memory_space<vmem>>, %arg1: memref<8x8xf32, #tpu.memory_space<vmem>>, %arg2: memref<3x32x32xf32, #tpu.memory_space<vmem>>, %arg3: memref<3x32xf32, #tpu.memory_space<vmem>>, %arg4: memref<8x24xf32, #tpu.memory_space<vmem>>, %arg5: memref<1x1xf32, #tpu.memory_space<smem>>) attributes {dimension_semantics = [], scalar_prefetch = 0 : i64, scratch_operands = 0 : i64, tpu.core_type = #tpu.core_type<tc>} {
    %c0 = arith.constant 0 : index
    %c0_0 = arith.constant 0 : index
    %0 = vector.load %arg0[%c0, %c0_0] : memref<8x40xf32, #tpu.memory_space<vmem>>, vector<8x16xf32>
    %c0_1 = arith.constant 0 : index
    %c0_2 = arith.constant 0 : index
    %c0_3 = arith.constant 0 : index
    %1 = vector.load %arg2[%c0_1, %c0_2, %c0_3] : memref<3x32x32xf32, #tpu.memory_space<vmem>>, vector<1x32x32xf32>
    %2 = vector.shape_cast %1 : vector<1x32x32xf32> to vector<32x32xf32>
    %3 = vector.extract_strided_slice %2 {offsets = [0, 0], sizes = [16, 32], strides = [1, 1]} : vector<32x32xf32> to vector<16x32xf32>
    %c0_4 = arith.constant 0 : index
    %c0_5 = arith.constant 0 : index
    %4 = vector.load %arg3[%c0_4, %c0_5] : memref<3x32xf32, #tpu.memory_space<vmem>>, vector<1x32xf32>
    %cst = arith.constant dense<0.000000e+00> : vector<8x32xf32>
    %5 = tpu.matmul %0, %3, %cst {dimension_numbers = #tpu.dot_dimension_numbers<[1], [0], [0], [1], [0, 0, 1, 1], [], []>} : vector<8x16xf32>, vector<16x32xf32>, vector<8x32xf32> -> vector<8x32xf32>
    %6 = vector.broadcast %4 : vector<1x32xf32> to vector<8x32xf32>
    %7 = arith.addf %5, %6 : vector<8x32xf32>
    %cst_6 = arith.constant 0.00999999977 : f32
    %8 = vector.broadcast %cst_6 : f32 to vector<8x32xf32>
    %9 = arith.mulf %8, %7 : vector<8x32xf32>
    %10 = arith.maximumf %7, %9 : vector<8x32xf32>
    %c1 = arith.constant 1 : index
    %c0_7 = arith.constant 0 : index
    %c0_8 = arith.constant 0 : index
    %11 = vector.load %arg2[%c1, %c0_7, %c0_8] : memref<3x32x32xf32, #tpu.memory_space<vmem>>, vector<1x32x32xf32>
    %12 = vector.shape_cast %11 : vector<1x32x32xf32> to vector<32x32xf32>
    %c1_9 = arith.constant 1 : index
    %c0_10 = arith.constant 0 : index
    %13 = vector.load %arg3[%c1_9, %c0_10] : memref<3x32xf32, #tpu.memory_space<vmem>>, vector<1x32xf32>
    %cst_11 = arith.constant dense<0.000000e+00> : vector<8x32xf32>
    %14 = tpu.matmul %10, %12, %cst_11 {dimension_numbers = #tpu.dot_dimension_numbers<[1], [0], [0], [1], [0, 0, 1, 1], [], []>} : vector<8x32xf32>, vector<32x32xf32>, vector<8x32xf32> -> vector<8x32xf32>
    %15 = vector.broadcast %13 : vector<1x32xf32> to vector<8x32xf32>
    %16 = arith.addf %14, %15 : vector<8x32xf32>
    %cst_12 = arith.constant 0.00999999977 : f32
    %17 = vector.broadcast %cst_12 : f32 to vector<8x32xf32>
    %18 = arith.mulf %17, %16 : vector<8x32xf32>
    %19 = arith.maximumf %16, %18 : vector<8x32xf32>
    %c2 = arith.constant 2 : index
    %c0_13 = arith.constant 0 : index
    %c0_14 = arith.constant 0 : index
    %20 = vector.load %arg2[%c2, %c0_13, %c0_14] : memref<3x32x32xf32, #tpu.memory_space<vmem>>, vector<1x32x32xf32>
    %21 = vector.shape_cast %20 : vector<1x32x32xf32> to vector<32x32xf32>
    %22 = vector.extract_strided_slice %21 {offsets = [0, 0], sizes = [32, 16], strides = [1, 1]} : vector<32x32xf32> to vector<32x16xf32>
    %c2_15 = arith.constant 2 : index
    %c0_16 = arith.constant 0 : index
    %23 = vector.load %arg3[%c2_15, %c0_16] : memref<3x32xf32, #tpu.memory_space<vmem>>, vector<1x16xf32>
    %cst_17 = arith.constant dense<0.000000e+00> : vector<8x16xf32>
    %24 = tpu.matmul %19, %22, %cst_17 {dimension_numbers = #tpu.dot_dimension_numbers<[1], [0], [0], [1], [0, 0, 1, 1], [], []>} : vector<8x32xf32>, vector<32x16xf32>, vector<8x16xf32> -> vector<8x16xf32>
    %25 = vector.broadcast %23 : vector<1x16xf32> to vector<8x16xf32>
    %26 = arith.addf %24, %25 : vector<8x16xf32>
    %27 = vector.extract_strided_slice %26 {offsets = [0, 0], sizes = [8, 8], strides = [1, 1]} : vector<8x16xf32> to vector<8x8xf32>
    %28 = vector.extract_strided_slice %26 {offsets = [0, 8], sizes = [8, 8], strides = [1, 1]} : vector<8x16xf32> to vector<8x8xf32>
    %cst_18 = arith.constant 5.000000e-01 : f32
    %29 = vector.broadcast %cst_18 : f32 to vector<8x8xf32>
    %30 = arith.mulf %29, %28 : vector<8x8xf32>
    %31 = math.exp %30 : vector<8x8xf32>
    %c0_19 = arith.constant 0 : index
    %c0_20 = arith.constant 0 : index
    %32 = vector.load %arg1[%c0_19, %c0_20] : memref<8x8xf32, #tpu.memory_space<vmem>>, vector<8x8xf32>
    %33 = arith.mulf %32, %31 : vector<8x8xf32>
    %34 = arith.addf %27, %33 : vector<8x8xf32>
    %35 = arith.mulf %31, %31 : vector<8x8xf32>
    %c0_21 = arith.constant 0 : index
    %c16 = arith.constant 16 : index
    %36 = vector.load %arg0[%c0_21, %c16] : memref<8x40xf32, #tpu.memory_space<vmem>>, vector<8x8xf32>
    %c0_22 = arith.constant 0 : index
    %c24 = arith.constant 24 : index
    %37 = vector.load %arg0[%c0_22, %c24] : memref<8x40xf32, #tpu.memory_space<vmem>>, vector<8x8xf32>
    %c0_23 = arith.constant 0 : index
    %c32 = arith.constant 32 : index
    %38 = vector.load %arg0[%c0_23, %c32] : memref<8x40xf32, #tpu.memory_space<vmem>>, vector<8x8xf32>
    %cst_24 = arith.constant 1.000000e+00 : f32
    %39 = vector.broadcast %cst_24 : f32 to vector<8x8xf32>
    %40 = arith.addf %39, %28 : vector<8x8xf32>
    %41 = arith.subf %40, %38 : vector<8x8xf32>
    %42 = arith.subf %27, %36 : vector<8x8xf32>
    %43 = arith.mulf %42, %42 : vector<8x8xf32>
    %44 = arith.addf %43, %35 : vector<8x8xf32>
    %45 = arith.divf %44, %37 : vector<8x8xf32>
    %46 = arith.subf %41, %45 : vector<8x8xf32>
    %47 = vector.shape_cast %46 : vector<8x8xf32> to vector<1x8x8xf32>
    %cst_25 = arith.constant dense<0.000000e+00> : vector<1xf32>
    %48 = vector.multi_reduction <add>, %47, %cst_25 [1, 2] : vector<1x8x8xf32> to vector<1xf32>
    %49 = vector.shape_cast %48 : vector<1xf32> to vector<1x1x1xf32>
    %50 = vector.extract %49[0, 0, 0] : f32 from vector<1x1x1xf32>
    %cst_26 = arith.constant -5.000000e-01 : f32
    %51 = arith.mulf %cst_26, %50 : f32
    %c0_27 = arith.constant 0 : index
    %c0_28 = arith.constant 0 : index
    %52 = vector.load %arg4[%c0_27, %c0_28] : memref<8x24xf32, #tpu.memory_space<vmem>>, vector<8x16xf32>
    tpu.vector_store %arg4[%c0_27, %c0_28], %26 {strides = array<i32>} : memref<8x24xf32, #tpu.memory_space<vmem>>, vector<8x16xf32>,
    %c0_29 = arith.constant 0 : index
    %c16_30 = arith.constant 16 : index
    %53 = vector.load %arg4[%c0_29, %c16_30] : memref<8x24xf32, #tpu.memory_space<vmem>>, vector<8x8xf32>
    tpu.vector_store %arg4[%c0_29, %c16_30], %34 {strides = array<i32>} : memref<8x24xf32, #tpu.memory_space<vmem>>, vector<8x8xf32>,
    %c0_31 = arith.constant 0 : index
    %c0_32 = arith.constant 0 : index
    %54 = memref.load %arg5[%c0_31, %c0_32] : memref<1x1xf32, #tpu.memory_space<smem>>
    memref.store %51, %arg5[%c0_31, %c0_32] : memref<1x1xf32, #tpu.memory_space<smem>>
    return
  }
}

</mosaic_0001>

<llo_original>
// kernel: tpu_custom_call.1
$region0: #{tpu_custom_call.1}
  #allocation0 [shape = 'u32[]', space=smem, size = 0x4, offset = 0x4, fixed_abs, tag = 'smem constant byte address 0x4 - core index']
  #allocation1 [shape = 'u32[144,128]{1,0:T(1,128)}', space=vmem, size = 0x12000, scoped, tag = 'internal scratch']
  %s0 = inlined_call_operand.hbm [shape: f32[8,40], index: 0, kind: input, shape index: {}]
  %s1 = inlined_call_operand.hbm [shape: f32[8,8], index: 1, kind: input, shape index: {}]
  %s2 = inlined_call_operand.hbm [shape: f32[3,32,32], index: 2, kind: input, shape index: {}]
  %s3 = inlined_call_operand.vmem [shape: f32[3,32], index: 3, kind: input, shape index: {}]
  %s4 = inlined_call_operand.hbm [shape: f32[8,24], index: 4, kind: output, shape index: {0}]
  %s5 = inlined_call_operand.hbm [shape: f32[1,1], index: 5, kind: output, shape index: {1}]
  %6 = xla_tuple %s4, %s5
  %s7 = sld [smem:[#allocation0]]
  $region46: #{tpu_custom_call.1} parent=0
    _
  %s9 = ssub.s32 1, %s7
  %s10 = scalar_select 0, %s9, %s7
  $region1: #{tpu_custom_call.1} parent=0
    #allocation2 [shape = 'u8[4096]{0}', space=vmem, size = 0x1000, scoped, tag = 'input window, operand 0, single buffered']
    #allocation3 [shape = 's32[1]{0}', space=sflag, size = 0x4, scoped, tag = 'scoped memory for tpu_custom_call.1']
    #allocation4 [shape = 's32[1]{0}', space=sflag, size = 0x4, scoped, tag = 'scoped memory for tpu_custom_call.1']
    #allocation5 [shape = 's32[1]{0}', space=sflag, size = 0x4, scoped, tag = 'scoped memory for tpu_custom_call.1']
    #allocation6 [shape = 'u8[4096]{0}', space=vmem, size = 0x1000, scoped, tag = 'input window, operand 1, single buffered']
    #allocation7 [shape = 's32[1]{0}', space=sflag, size = 0x4, scoped, tag = 'scoped memory for tpu_custom_call.1']
    #allocation8 [shape = 'u8[49152]{0}', space=vmem, size = 0xc000, scoped, tag = 'input window, operand 2, single buffered']
    #allocation9 [shape = 'u8[4096]{0}', space=vmem, size = 0x1000, scoped, tag = 'output window, operand 0, single buffered']
    #allocation10 [shape = 'u8[512]{0}', space=smem, size = 0x200, scoped, tag = 'output window, operand 1, single buffered']
    %11 = vsyncpa [#allocation3], 0
    %12 = vsyncpa [#allocation7], 0
    %13 = vsyncpa [#allocation4], 0
    %14 = vsyncpa [#allocation5], 0
    // Predicated region
    $region2: #{tpu_custom_call.1} parent=1 // pred_check
      _
    $region3: #{tpu_custom_call.1} parent=1 // pred_check_branch
      %16 = sbr.rel (0) target = $region5
    $region4: #{tpu_custom_call.1} parent=1 // pred_region
      %s18 = ssub.s32 128, 128
      %19 = vsyncadd [#allocation3], %s18
      %s21 = sshll.u32 [#allocation2], 4
      %s22 = int_to_ptr.vmem [resolvable:$true] %s21
      %24 = dma.hbm_to_vmem [thread:$0]  %s0, 128, %s22, [#allocation3]
    $region5: #{tpu_custom_call.1} parent=1 // pred_fallthru
      _
    // Predicated region
    $region6: #{tpu_custom_call.1} parent=1 // pred_check
      _
    $region7: #{tpu_custom_call.1} parent=1 // pred_check_branch
      %26 = sbr.rel (0) target = $region9
    $region8: #{tpu_custom_call.1} parent=1 // pred_region
      %s28 = ssub.s32 128, 128
      %29 = vsyncadd [#allocation7], %s28
      %s31 = sshll.u32 [#allocation6], 4
      %s32 = int_to_ptr.vmem [resolvable:$true] %s31
      %34 = dma.hbm_to_vmem [thread:$0]  %s1, 128, %s32, [#allocation7]
    $region9: #{tpu_custom_call.1} parent=1 // pred_fallthru
      _
    // Predicated region
    $region10: #{tpu_custom_call.1} parent=1 // pred_check
      _
    $region11: #{tpu_custom_call.1} parent=1 // pred_check_branch
      %36 = sbr.rel (0) target = $region13
    $region12: #{tpu_custom_call.1} parent=1 // pred_region
      %s38 = ssub.s32 1536, 1536
      %39 = vsyncadd [#allocation7], %s38
      %s40 = sshll.u32 [#allocation8], 4
      %s41 = int_to_ptr.vmem [resolvable:$true] %s40
      %46 = dma.hbm_to_vmem [thread:$0]  %s2, 1536, %s41, [#allocation7], 128, 128, 8
    $region13: #{tpu_custom_call.1} parent=1 // pred_fallthru
      _
    // Predicated region
    $region14: #{tpu_custom_call.1} parent=1 // pred_check
      _
    $region15: #{tpu_custom_call.1} parent=1 // pred_check_branch
      %48 = sbr.rel (0) target = $region17
    $region16: #{tpu_custom_call.1} parent=1 // pred_region
      _
    $region17: #{tpu_custom_call.1} parent=1 // pred_fallthru
      _
    // Predicated region
    $region18: #{tpu_custom_call.1} parent=1 // pred_check
      _
    $region19: #{tpu_custom_call.1} parent=1 // pred_check_branch
      %50 = sbr.rel (0) target = $region21
    $region20: #{tpu_custom_call.1} parent=1 // pred_region
      %51 = dma.done [#allocation3], 128
    $region21: #{tpu_custom_call.1} parent=1 // pred_fallthru
      _
    // Predicated region
    $region22: #{tpu_custom_call.1} parent=1 // pred_check
      _
    $region23: #{tpu_custom_call.1} parent=1 // pred_check_branch
      %53 = sbr.rel (0) target = $region25
    $region24: #{tpu_custom_call.1} parent=1 // pred_region
      %54 = dma.done [#allocation7], 128
    $region25: #{tpu_custom_call.1} parent=1 // pred_fallthru
      _
    // Predicated region
    $region26: #{tpu_custom_call.1} parent=1 // pred_check
      _
    $region27: #{tpu_custom_call.1} parent=1 // pred_check_branch
      %56 = sbr.rel (0) target = $region29
    $region28: #{tpu_custom_call.1} parent=1 // pred_region
      %57 = dma.done [#allocation7], 1536
    $region29: #{tpu_custom_call.1} parent=1 // pred_fallthru
      _
    %v58 = vld [vmem:[#allocation2] sm:$0xff]
    %v59 = vld [vmem:[#allocation8] sm:$0xff]
    %v60 = vld [vmem:[#allocation8 + $0x8] sm:$0xff]
    %v61 = vld [vmem:[%s3] sm:$0x1]
    %v62 = vlaneseq
    %v63 = vshrl.u32 %v62, 7
    %v64 = vsub.s32 0, %v63
    %v65 = vrot.slane %v61, %v64
    %vm66 = vcmask 130048
    %v68 = vsel %vm66, %v58, 0
    %70 = vmatprep.subr.mxu0 0.0
    %71 = vmatpush1.msra.mxu0 0.0
    %72 = vmatprep.subr.mxu0 0.0
    %73 = vmatpush1.msra.mxu0 0.0
    %74 = vmatprep.subr.mxu0 0.0
    %75 = vmatpush1.msra.mxu0 0.0
    %76 = vmatprep.subr.mxu0 0.0
    %77 = vmatpush1.msra.mxu0 0.0
    %78 = vmatprep.subr.mxu0 0.0
    %79 = vmatpush1.msra.mxu0 0.0
    %80 = vmatprep.subr.mxu0 0.0
    %81 = vmatpush1.msra.mxu0 0.0
    %82 = vmatprep.subr.mxu0 0.0
    %83 = vmatpush1.msra.mxu0 0.0
    %84 = vmatprep.subr.mxu0 0.0
    %85 = vmatpush1.msra.mxu0 0.0
    %86 = vmatprep.subr.mxu0 0.0
    %87 = vmatpush1.msra.mxu0 0.0
    %88 = vmatprep.subr.mxu0 0.0
    %89 = vmatpush1.msra.mxu0 0.0
    %90 = vmatprep.subr.mxu0 0.0
    %91 = vmatpush1.msra.mxu0 0.0
    %92 = vmatprep.subr.mxu0 0.0
    %93 = vmatpush1.msra.mxu0 0.0
    %94 = vmatprep.subr.mxu0 0.0
    %95 = vmatpush1.msra.mxu0 0.0
    %96 = vmatprep.subr.mxu0 0.0
    %97 = vmatpush1.msra.mxu0 0.0
    %98 = vmatprep.subr.mxu0 0.0
    %99 = vmatpush1.msra.mxu0 %v60
    %100 = vmatprep.subr.mxu0 0.0
    %101 = vmatpush1.msra.mxu0 %v59
    %102 = vmatprep.subr.mxu0 0.0
    %103 = vmatpush2.msra.mxu0 0.0
    %104 = vmatprep.subr.mxu0 0.0
    %105 = vmatpush2.msra.mxu0 0.0
    %106 = vmatprep.subr.mxu0 0.0
    %107 = vmatpush2.msra.mxu0 0.0
    %108 = vmatprep.subr.mxu0 0.0
    %109 = vmatpush2.msra.mxu0 0.0
    %110 = vmatprep.subr.mxu0 0.0
    %111 = vmatpush2.msra.mxu0 0.0
    %112 = vmatprep.subr.mxu0 0.0
    %113 = vmatpush2.msra.mxu0 0.0
    %114 = vmatprep.subr.mxu0 0.0
    %115 = vmatpush2.msra.mxu0 0.0
    %116 = vmatprep.subr.mxu0 0.0
    %117 = vmatpush2.msra.mxu0 0.0
    %118 = vmatprep.subr.mxu0 0.0
    %119 = vmatpush2.msra.mxu0 0.0
    %120 = vmatprep.subr.mxu0 0.0
    %121 = vmatpush2.msra.mxu0 0.0
    %122 = vmatprep.subr.mxu0 0.0
    %123 = vmatpush2.msra.mxu0 0.0
    %124 = vmatprep.subr.mxu0 0.0
    %125 = vmatpush2.msra.mxu0 0.0
    %126 = vmatprep.subr.mxu0 0.0
    %127 = vmatpush2.msra.mxu0 0.0
    %128 = vmatprep.subr.mxu0 0.0
    %129 = vmatpush2.msra.mxu0 0.0
    %130 = vmatprep.subr.mxu0 0.0
    %131 = vmatpush2.msra.mxu0 0.0
    %132 = vmatprep.subr.mxu0 0.0
    %133 = vmatpush2.msra.mxu0 0.0
    %134 = vmatprep.mubr.f32.mxu0 0.0
    %135 = vmatmul.mubr.f32.gmra.mxu0 %v68
    %v136 = vpop.f32.mrf.mxu0
    %v137 = vadd.f32 %v65, %v136
    %v138 = vpop.f32.mrf.mxu0
    %139 = vdwg.mxu0
    %v140 = vmul.f32 %v137, 0.01
    %v141 = vmax.f32 %v137, %v140
    %s142 = scalar_lea.vmem [#allocation8], 32
    %v143 = vld [vmem:[%s142] sm:$0xff]
    %v144 = vld [vmem:[%s142 + $0x8] sm:$0xff]
    %v145 = vld [vmem:[%s142 + $0x10] sm:$0xff]
    %v146 = vld [vmem:[%s142 + $0x18] sm:$0xff]
    %v147 = vld [vmem:[%s3 + $0x1] sm:$0x1]
    %v148 = vlaneseq
    %v149 = vshrl.u32 %v148, 7
    %v150 = vsub.s32 0, %v149
    %v151 = vrot.slane %v147, %v150
    %vm152 = vcmask 261120
    %v154 = vsel %vm152, %v141, 0
    %156 = vmatprep.subr.mxu0 0.0
    %157 = vmatpush1.msra.mxu0 0.0
    %158 = vmatprep.subr.mxu0 0.0
    %159 = vmatpush1.msra.mxu0 0.0
    %160 = vmatprep.subr.mxu0 0.0
    %161 = vmatpush1.msra.mxu0 0.0
    %162 = vmatprep.subr.mxu0 0.0
    %163 = vmatpush1.msra.mxu0 0.0
    %164 = vmatprep.subr.mxu0 0.0
    %165 = vmatpush1.msra.mxu0 0.0
    %166 = vmatprep.subr.mxu0 0.0
    %167 = vmatpush1.msra.mxu0 0.0
    %168 = vmatprep.subr.mxu0 0.0
    %169 = vmatpush1.msra.mxu0 0.0
    %170 = vmatprep.subr.mxu0 0.0
    %171 = vmatpush1.msra.mxu0 0.0
    %172 = vmatprep.subr.mxu0 0.0
    %173 = vmatpush1.msra.mxu0 0.0
    %174 = vmatprep.subr.mxu0 0.0
    %175 = vmatpush1.msra.mxu0 0.0
    %176 = vmatprep.subr.mxu0 0.0
    %177 = vmatpush1.msra.mxu0 0.0
    %178 = vmatprep.subr.mxu0 0.0
    %179 = vmatpush1.msra.mxu0 0.0
    %180 = vmatprep.subr.mxu0 0.0
    %181 = vmatpush1.msra.mxu0 %v146
    %182 = vmatprep.subr.mxu0 0.0
    %183 = vmatpush1.msra.mxu0 %v145
    %184 = vmatprep.subr.mxu0 0.0
    %185 = vmatpush1.msra.mxu0 %v144
    %186 = vmatprep.subr.mxu0 0.0
    %187 = vmatpush1.msra.mxu0 %v143
    %188 = vmatprep.subr.mxu0 0.0
    %189 = vmatpush2.msra.mxu0 0.0
    %190 = vmatprep.subr.mxu0 0.0
    %191 = vmatpush2.msra.mxu0 0.0
    %192 = vmatprep.subr.mxu0 0.0
    %193 = vmatpush2.msra.mxu0 0.0
    %194 = vmatprep.subr.mxu0 0.0
    %195 = vmatpush2.msra.mxu0 0.0
    %196 = vmatprep.subr.mxu0 0.0
    %197 = vmatpush2.msra.mxu0 0.0
    %198 = vmatprep.subr.mxu0 0.0
    %199 = vmatpush2.msra.mxu0 0.0
    %200 = vmatprep.subr.mxu0 0.0
    %201 = vmatpush2.msra.mxu0 0.0
    %202 = vmatprep.subr.mxu0 0.0
    %203 = vmatpush2.msra.mxu0 0.0
    %204 = vmatprep.subr.mxu0 0.0
    %205 = vmatpush2.msra.mxu0 0.0
    %206 = vmatprep.subr.mxu0 0.0
    %207 = vmatpush2.msra.mxu0 0.0
    %208 = vmatprep.subr.mxu0 0.0
    %209 = vmatpush2.msra.mxu0 0.0
    %210 = vmatprep.subr.mxu0 0.0
    %211 = vmatpush2.msra.mxu0 0.0
    %212 = vmatprep.subr.mxu0 0.0
    %213 = vmatpush2.msra.mxu0 0.0
    %214 = vmatprep.subr.mxu0 0.0
    %215 = vmatpush2.msra.mxu0 0.0
    %216 = vmatprep.subr.mxu0 0.0
    %217 = vmatpush2.msra.mxu0 0.0
    %218 = vmatprep.subr.mxu0 0.0
    %219 = vmatpush2.msra.mxu0 0.0
    %220 = vmatprep.mubr.f32.mxu0 0.0
    %221 = vmatmul.mubr.f32.gmra.mxu0 %v154
    %v222 = vpop.f32.mrf.mxu0
    %v223 = vadd.f32 %v151, %v222
    %v224 = vpop.f32.mrf.mxu0
    %225 = vdwg.mxu0
    %v226 = vmul.f32 %v223, 0.01
    %v227 = vmax.f32 %v223, %v226
    %s228 = scalar_lea.vmem [#allocation8], 64
    %v229 = vld [vmem:[%s228] sm:$0xff]
    %v230 = vld [vmem:[%s228 + $0x8] sm:$0xff]
    %v231 = vld [vmem:[%s228 + $0x10] sm:$0xff]
    %v232 = vld [vmem:[%s228 + $0x18] sm:$0xff]
    %v233 = vld [vmem:[%s3 + $0x2] sm:$0x1]
    %v234 = vlaneseq
    %v235 = vshrl.u32 %v234, 7
    %v236 = vsub.s32 0, %v235
    %v237 = vrot.slane %v233, %v236
    %v239 = vsel %vm152, %v227, 0
    %241 = vmatprep.subr.mxu0 0.0
    %242 = vmatpush1.msra.mxu0 0.0
    %243 = vmatprep.subr.mxu0 0.0
    %244 = vmatpush1.msra.mxu0 0.0
    %245 = vmatprep.subr.mxu0 0.0
    %246 = vmatpush1.msra.mxu0 0.0
    %247 = vmatprep.subr.mxu0 0.0
    %248 = vmatpush1.msra.mxu0 0.0
    %249 = vmatprep.subr.mxu0 0.0
    %250 = vmatpush1.msra.mxu0 0.0
    %251 = vmatprep.subr.mxu0 0.0
    %252 = vmatpush1.msra.mxu0 0.0
    %253 = vmatprep.subr.mxu0 0.0
    %254 = vmatpush1.msra.mxu0 0.0
    %255 = vmatprep.subr.mxu0 0.0
    %256 = vmatpush1.msra.mxu0 0.0
    %257 = vmatprep.subr.mxu0 0.0
    %258 = vmatpush1.msra.mxu0 0.0
    %259 = vmatprep.subr.mxu0 0.0
    %260 = vmatpush1.msra.mxu0 0.0
    %261 = vmatprep.subr.mxu0 0.0
    %262 = vmatpush1.msra.mxu0 0.0
    %263 = vmatprep.subr.mxu0 0.0
    %264 = vmatpush1.msra.mxu0 0.0
    %265 = vmatprep.subr.mxu0 0.0
    %266 = vmatpush1.msra.mxu0 %v232
    %267 = vmatprep.subr.mxu0 0.0
    %268 = vmatpush1.msra.mxu0 %v231
    %269 = vmatprep.subr.mxu0 0.0
    %270 = vmatpush1.msra.mxu0 %v230
    %271 = vmatprep.subr.mxu0 0.0
    %272 = vmatpush1.msra.mxu0 %v229
    %273 = vmatprep.subr.mxu0 0.0
    %274 = vmatpush2.msra.mxu0 0.0
    %275 = vmatprep.subr.mxu0 0.0
    %276 = vmatpush2.msra.mxu0 0.0
    %277 = vmatprep.subr.mxu0 0.0
    %278 = vmatpush2.msra.mxu0 0.0
    %279 = vmatprep.subr.mxu0 0.0
    %280 = vmatpush2.msra.mxu0 0.0
    %281 = vmatprep.subr.mxu0 0.0
    %282 = vmatpush2.msra.mxu0 0.0
    %283 = vmatprep.subr.mxu0 0.0
    %284 = vmatpush2.msra.mxu0 0.0
    %285 = vmatprep.subr.mxu0 0.0
    %286 = vmatpush2.msra.mxu0 0.0
    %287 = vmatprep.subr.mxu0 0.0
    %288 = vmatpush2.msra.mxu0 0.0
    %289 = vmatprep.subr.mxu0 0.0
    %290 = vmatpush2.msra.mxu0 0.0
    %291 = vmatprep.subr.mxu0 0.0
    %292 = vmatpush2.msra.mxu0 0.0
    %293 = vmatprep.subr.mxu0 0.0
    %294 = vmatpush2.msra.mxu0 0.0
    %295 = vmatprep.subr.mxu0 0.0
    %296 = vmatpush2.msra.mxu0 0.0
    %297 = vmatprep.subr.mxu0 0.0
    %298 = vmatpush2.msra.mxu0 0.0
    %299 = vmatprep.subr.mxu0 0.0
    %300 = vmatpush2.msra.mxu0 0.0
    %301 = vmatprep.subr.mxu0 0.0
    %302 = vmatpush2.msra.mxu0 0.0
    %303 = vmatprep.subr.mxu0 0.0
    %304 = vmatpush2.msra.mxu0 0.0
    %305 = vmatprep.mubr.f32.mxu0 0.0
    %306 = vmatmul.mubr.f32.gmra.mxu0 %v239
    %v307 = vpop.f32.mrf.mxu0
    %v308 = vadd.f32 %v237, %v307
    %v309 = vpop.f32.mrf.mxu0
    %310 = vdwg.mxu0
    %v311 = vmul.f32 %v308, 0.5
    %v312 = vmul.f32 %v311, 1.442695
    %v313 = vpow.pop %v312
    %v314 = vld [vmem:[#allocation6] sm:$0xff]
    %316 = vrot.lane.b32.xlu0 %v313, 120
    %v317 = vpop.permute.xlu0 %316
    %v319 = vmul.f32 %v314, %v317
    %v320 = vadd.f32 %v308, %v319
    %v321 = vmul.f32 %v313, %v313
    %v322 = vadd.f32 %v308, 1.0
    %323 = vrot.lane.b32.xlu0 %v58, 104
    %v324 = vpop.permute.xlu0 %323
    %v326 = vsub.f32 %v322, %v324
    %327 = vrot.lane.b32.xlu0 %v58, 112
    %v328 = vpop.permute.xlu0 %327
    %v330 = vsub.f32 %v308, %v328
    %v331 = vmul.f32 %v330, %v330
    %333 = vrot.lane.b32.xlu0 %v321, 120
    %v334 = vpop.permute.xlu0 %333
    %v336 = vadd.f32 %v331, %v334
    %v337 = vrcp.pop %v324
    %v338 = vmul.f32 %v336, %v337
    %340 = vrot.lane.b32.xlu0 %v338, 8
    %v341 = vpop.permute.xlu0 %340
    %v343 = vsub.f32 %v326, %v341
    %345 = vrot.lane.b32.xlu0 %v343, 120
    %v346 = vpop.permute.xlu0 %345
    %vm348 = vcmask 64512
    %v349 = vsel %vm348, %v346, 0.0
    %350 = vadd.xlane.f32.xlu0 %v349
    %v351 = vpop.xlane.xlu0 %350
    %v352 = vrot.slane %v351, 4
    %v353 = vadd.f32 %v351, %v352
    %v354 = vrot.slane %v353, 2
    %v355 = vadd.f32 %v353, %v354
    %v356 = vrot.slane %v355, 1
    %v357 = vadd.f32 %v355, %v356
    %s358 = vtos %v357
    %s359 = smul.f32 %s358, -0.5
    %360 = vst.msk [vmem:[#allocation9] sm:$0xff] %vm66, %v308
    %362 = vrot.lane.b32.xlu0 %v320, 16
    %v363 = vpop.permute.xlu0 %362
    %vm365 = vcmask 195712
    %366 = vst.msk [vmem:[#allocation9] sm:$0xff] %vm365, %v363
    %s367 = scalar_lea.smem [#allocation10], 0
    %368 = sst [smem:[%s367]] %s359
    // Predicated region
    $region30: #{tpu_custom_call.1} parent=1 // pred_check
      _
    $region31: #{tpu_custom_call.1} parent=1 // pred_check_branch
      %370 = sbr.rel (0) target = $region33
    $region32: #{tpu_custom_call.1} parent=1 // pred_region
      %s372 = ssub.s32 128, 128
      %373 = vsyncadd [#allocation4], %s372
      %s375 = sshll.u32 [#allocation9], 4
      %s376 = int_to_ptr.vmem [resolvable:$true] %s375
      %378 = dma.vmem_to_hbm [thread:$0]  %s376, 128, %s4, [#allocation4]
    $region33: #{tpu_custom_call.1} parent=1 // pred_fallthru
      _
    // Predicated region
    $region34: #{tpu_custom_call.1} parent=1 // pred_check
      _
    $region35: #{tpu_custom_call.1} parent=1 // pred_check_branch
      %380 = sbr.rel (0) target = $region37
    $region36: #{tpu_custom_call.1} parent=1 // pred_region
      %s382 = ssub.s32 16, 16
      %383 = vsyncadd [#allocation5], %s382
      %386 = dma.smem_to_hbm [#allocation10], 16, %s5, [#allocation5]
    $region37: #{tpu_custom_call.1} parent=1 // pred_fallthru
      _
    // Predicated region
    $region38: #{tpu_custom_call.1} parent=1 // pred_check
      _
    $region39: #{tpu_custom_call.1} parent=1 // pred_check_branch
      %388 = sbr.rel (0) target = $region41
    $region40: #{tpu_custom_call.1} parent=1 // pred_region
      %389 = dma.done [#allocation4], 128
    $region41: #{tpu_custom_call.1} parent=1 // pred_fallthru
      _
    // Predicated region
    $region42: #{tpu_custom_call.1} parent=1 // pred_check
      _
    $region43: #{tpu_custom_call.1} parent=1 // pred_check_branch
      %391 = sbr.rel (0) target = $region45
    $region44: #{tpu_custom_call.1} parent=1 // pred_region
      %392 = dma.done [#allocation5], 16
    $region45: #{tpu_custom_call.1} parent=1 // pred_fallthru
      _
    %393 = sfence
    %394 = vsyncpa [#allocation3], 1
    %395 = vsyncpa [#allocation7], 1
    %396 = vsyncpa [#allocation4], 1
    %397 = vsyncpa [#allocation5], 1

</llo_original>
